<compile_context>
chip_gen: v7x
topology: tpu7x:2x2x1
jax: 0.10.0
libtpu: 0.0.40
codegen_flags: <defaults>
</compile_context>

<pallas_src>
import functools

import jax
import jax.numpy as jnp
from jax import lax
from jax.experimental import pallas as pl
from jax.experimental.pallas import tpu as pltpu


def _round_up(v, m):
    return ((v + m - 1) // m) * m


def _vmem_capacity_bytes():
    """Physical per-core VMEM; conservative 64 MiB (v7x) fallback."""
    try:
        info = pltpu.get_tpu_info()
        cap = getattr(info, "vmem_capacity_bytes", None)
        if cap:
            return int(cap)
    except Exception:
        pass
    return 64 << 20


# ---------------------------------------------------------------------------
# Kernel 1: batch-invariant LoRA fusion (runs once, whole arrays in VMEM).
# ---------------------------------------------------------------------------
def _lora_fuse_kernel(score_ref, expand_ref, a_ref, b_ref, w_ref, bias_ref,
                      lbias_ref, w_out_ref, bias_out_ref, *, num_loras,
                      apply_bias):
    """score_ref   : (1, NL_p)           raw scores (padded lanes masked)
    expand_ref  : (NL_p, NR_p)         one-hot expert->column expansion (x r)
    a_ref       : (K*C_in_p, NR_p)     stacked lora_A (tap-major rows)
    b_ref       : (NR_p, C_out_p)      stacked lora_B
    w_ref       : (K, C_in_p, C_out_p) base conv weight (tap-major)
    bias_ref    : (1, C_out_p)         base conv bias
    lbias_ref   : (NL_p, C_out_p)      lora bias (zeros if unused)
    w_out_ref   : (K, C_in_p, C_out_p) fused weight (compute dtype)
    bias_out_ref: (1, C_out_p)         fused bias (f32)
    """
    s = score_ref[...]
    # Robust masked softmax: padded lanes get exactly 0 probability.
    mask = lax.broadcasted_iota(jnp.int32, s.shape, 1) < num_loras
    s = jnp.where(mask, s, -jnp.inf)
    s = s - jnp.max(s, axis=-1, keepdims=True)
    ex = jnp.where(mask, jnp.exp(s), 0.0)
    score = ex / jnp.sum(ex, axis=-1, keepdims=True)            # (1, NL_p)
    # Per-column scale: column n*r+j of the stacked A gets softmax score n.
    scale = jnp.dot(score, expand_ref[...],
                    preferred_element_type=jnp.float32)          # (1, NR_p)
    delta = jnp.dot(a_ref[...] * scale, b_ref[...],
                    preferred_element_type=jnp.float32)          # (KCp, Coutp)
    k, c_in_p, c_out_p = w_ref.shape
    w_out_ref[...] = (w_ref[...] + delta.reshape(k, c_in_p, c_out_p)
                      ).astype(w_out_ref.dtype)
    bias = bias_ref[...]
    if apply_bias:
        bias = bias + jnp.dot(score, lbias_ref[...],
                              preferred_element_type=jnp.float32)
    bias_out_ref[...] = bias


# ---------------------------------------------------------------------------
# Kernel 2: the conv; per-tap matmuls over the whole flattened batch tile.
# ---------------------------------------------------------------------------
def _conv1d_kernel(w_ref, bias_ref, x_ref, out_ref, *, kernel_size):
    """w_ref   : (K, C_in_p, C_out_p)       fused weight (grid-invariant)
    bias_ref: (1, C_out_p)               f32
    x_ref   : (B_TILE, L_in_p, C_in_p)   conv-padded input slab
    out_ref : (B_TILE, L_out_p, C_out_p)
    """
    b_tile, l_out_p, c_out_p = out_ref.shape
    c_in_p = x_ref.shape[-1]
    m = b_tile * l_out_p
    acc = jnp.zeros((m, c_out_p), jnp.float32)
    for tap in range(kernel_size):                 # static, K small (e.g. 3)
        xs = x_ref[:, pl.ds(tap, l_out_p), :].reshape(m, c_in_p)
        acc = acc + jnp.dot(xs, w_ref[tap],
                            preferred_element_type=jnp.float32)
    acc = acc + bias_ref[...]
    out_ref[...] = acc.reshape(b_tile, l_out_p, c_out_p).astype(out_ref.dtype)


# ---------------------------------------------------------------------------
# Wrapper
# ---------------------------------------------------------------------------
def lora_conv1d(x, base_weight, base_bias, lora_A, lora_B, lora_scores,
                lora_bias=None, *, tuner_index=0, stride=1, padding=0,
                apply_bias=False, compute_dtype=jnp.bfloat16, out_dtype=None):
    """x: (N, C_in, L) NCL; base_weight: (C_out, C_in, K) as in torch.Conv1d.

    compute_dtype: activation/weight dtype fed to the MXU (f32 accumulation).
    out_dtype:     conv output dtype (default x.dtype; pass bf16 to halve
                   output HBM writeback when downstream tolerates it).
    """
    assert stride == 1  # TODO(synk): strided conv1d (base_layer.stride > 1)
    n_batch, c_in, length = x.shape
    c_out, c_in_w, ksize = base_weight.shape
    assert c_in_w == c_in
    num_loras, r, ck = lora_A.shape
    assert ck == c_in * ksize
    f32 = jnp.float32
    out_dtype = x.dtype if out_dtype is None else out_dtype

    # ---- padded geometry (lane-dense channels, sublane-aligned lengths) ----
    c_in_p = _round_up(c_in, 128)
    c_out_p = _round_up(c_out, 128)
    l_out = length + 2 * padding - ksize + 1
    assert l_out >= 1
    l_out_p = _round_up(l_out, 8)
    l_in_p = _round_up(max(length + 2 * padding, l_out_p + ksize - 1), 8)
    kcp = ksize * c_in_p
    nl_p = _round_up(num_loras, 128)
    nr_p = _round_up(num_loras * r, 128)

    # ---- batch-invariant parameter layout prep (tiny, pure-JAX glue) ----
    score = lora_scores[tuner_index].astype(f32).reshape(1, num_loras)
    score_p = jnp.pad(score, ((0, 0), (0, nl_p - num_loras)))
    expand = jnp.repeat(jnp.eye(num_loras, dtype=f32), r, axis=1)
    expand_p = jnp.pad(expand, ((0, nl_p - num_loras),
                                (0, nr_p - num_loras * r)))
    # lora_A last dim is (c_in, k)-major in torch; re-stack tap-major and pad
    # channels so row index = tap * C_in_p + c_in (matches the conv weight).
    a4 = lora_A.astype(f32).reshape(num_loras, r, c_in, ksize)
    a4 = jnp.transpose(a4, (3, 2, 0, 1))                # (K, C_in, n, r)
    a4 = jnp.pad(a4, ((0, 0), (0, c_in_p - c_in), (0, 0), (0, 0)))
    a_t = a4.reshape(kcp, num_loras * r)
    a_t = jnp.pad(a_t, ((0, 0), (0, nr_p - num_loras * r)))
    b_t = jnp.transpose(lora_B.astype(f32), (0, 2, 1)).reshape(
        num_loras * r, c_out)
    b_t = jnp.pad(b_t, ((0, nr_p - num_loras * r), (0, c_out_p - c_out)))
    w_t = jnp.transpose(base_weight.astype(f32), (2, 1, 0))   # (K, Cin, Cout)
    w_t = jnp.pad(w_t, ((0, 0), (0, c_in_p - c_in), (0, c_out_p - c_out)))
    bias_p = jnp.pad(base_bias.astype(f32).reshape(1, c_out),
                     ((0, 0), (0, c_out_p - c_out)))
    if lora_bias is None:
        lora_bias = jnp.zeros((num_loras, c_out), f32)
    lbias_p = jnp.pad(lora_bias.astype(f32),
                      ((0, nl_p - num_loras), (0, c_out_p - c_out)))

    # ---- VMEM budget derived from the actual chip generation ----
    cd_bytes = jnp.dtype(compute_dtype).itemsize
    out_bytes = jnp.dtype(out_dtype).itemsize
    cap = _vmem_capacity_bytes()
    budget = (cap * 3) // 4          # ~48 MiB on v7x, ~96 MiB on v5e/v6e

    # ---- kernel 1: fuse W + sum_n softmax(score)_n * (B_n @ A_n), once ----
    fuse_bytes = 4 * (nl_p + nl_p * nr_p + kcp * nr_p + nr_p * c_out_p
                      + kcp * c_out_p + 2 * c_out_p + nl_p * c_out_p)
    fuse_bytes += kcp * c_out_p * cd_bytes
    fuse_vmem = int(min(budget, max(16 << 20, 2 * fuse_bytes + (4 << 20))))
    fuse = functools.partial(_lora_fuse_kernel, num_loras=num_loras,
                             apply_bias=apply_bias)
    w_adj, bias_adj = pl.pallas_call(
        fuse,
        out_shape=(jax.ShapeDtypeStruct((ksize, c_in_p, c_out_p),
                                        compute_dtype),
                   jax.ShapeDtypeStruct((1, c_out_p), f32)),
        compiler_params=pltpu.CompilerParams(vmem_limit_bytes=fuse_vmem),
    )(score_p, expand_p, a_t, b_t, w_t, bias_p, lbias_p)

    # ---- batch tile sizing: claim most of the budget (minus the resident,
    # double-buffered weight and headroom) for big per-step DMAs; keep >= 2
    # grid steps so both v7x TensorCores get work. ----
    per_sample = (2 * (l_in_p * c_in_p * cd_bytes          # input (2 bufs)
                       + l_out_p * c_out_p * out_bytes)    # output (2 bufs)
                  + l_out_p * c_out_p * 4                  # f32 accumulator
                  + l_out_p * c_in_p * cd_bytes)           # per-tap slice temp
    weight_bytes = 2 * (ksize * c_in_p * c_out_p * cd_bytes + c_out_p * 4)
    headroom = 2 << 20
    data_budget = max(per_sample, budget - weight_bytes - headroom)
    b_tile = max(1, int(data_budget // per_sample))
    b_tile = min(b_tile, n_batch)
    if n_batch >= 2:
        b_tile = min(b_tile, (n_batch + 1) // 2)
    # TODO(synk): when b_tile == 1 and n_batch is tiny, add an L-axis grid dim
    # (with K-1 halo in the input index_map) so both v7x TCs still have work.
    n_tiles = pl.cdiv(n_batch, b_tile)
    n_pad = n_tiles * b_tile
    vmem_limit = int(min(cap - (4 << 20),
                         max(budget,
                             weight_bytes + b_tile * per_sample + (4 << 20))))

    # ---- input layout: NCL -> (N_pad, L_in_p, C_in_p), conv-padded ----
    # TODO(synk): accept NLC input / emit NLC output directly to avoid this
    # wrapper-side HBM transpose+pad round trip of the activations.
    x_nlc = jnp.transpose(x, (0, 2, 1))
    x_slab = jnp.pad(x_nlc, ((0, n_pad - n_batch),
                             (padding, l_in_p - length - padding),
                             (0, c_in_p - c_in))).astype(compute_dtype)

    conv = functools.partial(_conv1d_kernel, kernel_size=ksize)
    out_slab = pl.pallas_call(
        conv,
        out_shape=jax.ShapeDtypeStruct((n_pad, l_out_p, c_out_p), out_dtype),
        grid=(n_tiles,),
        in_specs=[
            pl.BlockSpec((ksize, c_in_p, c_out_p), lambda i: (0, 0, 0)),
            pl.BlockSpec((1, c_out_p), lambda i: (0, 0)),
            pl.BlockSpec((b_tile, l_in_p, c_in_p), lambda i: (i, 0, 0)),
        ],
        out_specs=pl.BlockSpec((b_tile, l_out_p, c_out_p),
                               lambda i: (i, 0, 0)),
        compiler_params=pltpu.CompilerParams(
            dimension_semantics=("parallel",),
            vmem_limit_bytes=vmem_limit),
    )(w_adj, bias_adj, x_slab)

    out = out_slab[:n_batch, :l_out, :c_out]
    return jnp.transpose(out, (0, 2, 1))                   # back to NCL


def lora_conv1d_ref(x, base_weight, base_bias, lora_A, lora_B, lora_scores,
                    lora_bias, *, tuner_index, padding, apply_bias):
    """Pure-JAX mirror of the PyTorch forward (for verification)."""
    score = jax.nn.softmax(lora_scores[tuner_index])
    delta = jnp.einsum('nor,nri->noi', lora_B, lora_A)
    delta = jnp.einsum('n,noi->oi', score, delta)
    c_out, c_in, k = base_weight.shape
    w = base_weight + delta.reshape(c_out, c_in, k)
    bias = base_bias
    if apply_bias:
        bias = bias + jnp.einsum('n,no->o', score, lora_bias)
    out = jax.lax.conv_general_dilated(
        x, w, window_strides=(1,), padding=[(padding, padding)],
        dimension_numbers=('NCH', 'OIH', 'NCH'))
    return out + bias[None, :, None]


if __name__ == "__main__":
    # Small, module-consistent shapes.
    N, C_IN, L = 2, 4, 16
    C_OUT, K = 8, 3
    PADDING, STRIDE = 1, 1
    NUM_GROUP, NUM_LORAS, R = 2, 4, 2
    TUNER_INDEX = 0
    APPLY_BIAS = True

    key = jax.random.PRNGKey(0)
    ks = jax.random.split(key, 8)
    x = jax.random.normal(ks[0], (N, C_IN, L), jnp.float32)
    base_weight = jax.random.normal(ks[1], (C_OUT, C_IN, K), jnp.float32) * 0.1
    base_bias = jax.random.normal(ks[2], (C_OUT,), jnp.float32) * 0.1
    # Deterministic synthetic params (nonzero so the LoRA path is exercised;
    # the torch module would zero-init lora_B / lora_bias).
    lora_scores = jax.random.normal(ks[3], (NUM_GROUP, NUM_LORAS), jnp.float32)
    lora_A = jax.random.normal(ks[4], (NUM_LORAS, R, C_IN * K), jnp.float32) * 0.2
    lora_B = jax.random.normal(ks[5], (NUM_LORAS, C_OUT, R), jnp.float32) * 0.2
    lora_bias = jax.random.normal(ks[6], (NUM_LORAS, C_OUT), jnp.float32) * 0.1

    ref = lora_conv1d_ref(x, base_weight, base_bias, lora_A, lora_B,
                          lora_scores, lora_bias, tuner_index=TUNER_INDEX,
                          padding=PADDING, apply_bias=APPLY_BIAS)

    # f32 compute path: tight algorithmic check.
    out_f32 = lora_conv1d(x, base_weight, base_bias, lora_A, lora_B,
                          lora_scores, lora_bias, tuner_index=TUNER_INDEX,
                          stride=STRIDE, padding=PADDING,
                          apply_bias=APPLY_BIAS, compute_dtype=jnp.float32)
    out_f32 = jax.block_until_ready(out_f32)
    assert out_f32.shape == (N, C_OUT, L + 2 * PADDING - K + 1)
    assert jnp.allclose(out_f32, ref, atol=1e-3, rtol=1e-3), (
        f"f32 max abs err {jnp.max(jnp.abs(out_f32 - ref))}")

    # Default bf16 compute path (f32 accumulation): looser tolerance.
    out_bf16 = lora_conv1d(x, base_weight, base_bias, lora_A, lora_B,
                           lora_scores, lora_bias, tuner_index=TUNER_INDEX,
                           stride=STRIDE, padding=PADDING,
                           apply_bias=APPLY_BIAS)
    out_bf16 = jax.block_until_ready(out_bf16)
    assert out_bf16.shape == (N, C_OUT, L + 2 * PADDING - K + 1)
    assert jnp.allclose(out_bf16, ref, atol=3e-2, rtol=3e-2), (
        f"bf16 max abs err {jnp.max(jnp.abs(out_bf16 - ref))}")

    # Non-divisible batch (exercises padded batch tiles / multi-step grid).
    N5 = 5
    x5 = jax.random.normal(ks[7], (N5, C_IN, L), jnp.float32)
    ref5 = lora_conv1d_ref(x5, base_weight, base_bias, lora_A, lora_B,
                           lora_scores, lora_bias, tuner_index=TUNER_INDEX,
                           padding=PADDING, apply_bias=APPLY_BIAS)
    out5 = lora_conv1d(x5, base_weight, base_bias, lora_A, lora_B,
                       lora_scores, lora_bias, tuner_index=TUNER_INDEX,
                       stride=STRIDE, padding=PADDING,
                       apply_bias=APPLY_BIAS, compute_dtype=jnp.float32)
    out5 = jax.block_until_ready(out5)
    assert out5.shape == (N5, C_OUT, L + 2 * PADDING - K + 1)
    assert jnp.allclose(out5, ref5, atol=1e-3, rtol=1e-3), (
        f"batch=5 max abs err {jnp.max(jnp.abs(out5 - ref5))}")

    print("KERNEL_OK")
</pallas_src>

<mosaic_0001>
module attributes {stable_mosaic.version = 11 : i64} {
  func.func @_lora_fuse_kernel(%arg0: memref<1x128xf32, #tpu.memory_space<vmem>>, %arg1: memref<128x128xf32, #tpu.memory_space<vmem>>, %arg2: memref<384x128xf32, #tpu.memory_space<vmem>>, %arg3: memref<128x128xf32, #tpu.memory_space<vmem>>, %arg4: memref<3x128x128xf32, #tpu.memory_space<vmem>>, %arg5: memref<1x128xf32, #tpu.memory_space<vmem>>, %arg6: memref<128x128xf32, #tpu.memory_space<vmem>>, %arg7: memref<3x128x128xf32, #tpu.memory_space<vmem>>, %arg8: memref<1x128xf32, #tpu.memory_space<vmem>>) attributes {dimension_semantics = [], scalar_prefetch = 0 : i64, scratch_operands = 0 : i64, tpu.core_type = #tpu.core_type<tc>} {
    %c0 = arith.constant 0 : index
    %c0_0 = arith.constant 0 : index
    %0 = vector.load %arg0[%c0, %c0_0] : memref<1x128xf32, #tpu.memory_space<vmem>>, vector<1x128xf32>
    %1 = tpu.iota {dimensions = array<i32: 1>} : vector<1x128xi32>
    %c4_i32 = arith.constant 4 : i32
    %2 = vector.broadcast %c4_i32 : i32 to vector<1x128xi32>
    %3 = arith.cmpi slt, %1, %2 : vector<1x128xi32>
    %cst = arith.constant 0xFF800000 : f32
    %4 = vector.broadcast %cst : f32 to vector<1x128xf32>
    %5 = arith.select %3, %0, %4 : vector<1x128xi1>, vector<1x128xf32>
    %cst_1 = arith.constant dense<0xFF800000> : vector<1xf32>
    %6 = vector.multi_reduction <maximumf>, %5, %cst_1 [1] : vector<1x128xf32> to vector<1xf32>
    %7 = vector.shape_cast %6 : vector<1xf32> to vector<1x1xf32>
    %8 = vector.broadcast %7 : vector<1x1xf32> to vector<1x128xf32>
    %9 = arith.subf %5, %8 : vector<1x128xf32>
    %10 = math.exp %9 : vector<1x128xf32>
    %cst_2 = arith.constant 0.000000e+00 : f32
    %11 = vector.broadcast %cst_2 : f32 to vector<1x128xf32>
    %12 = arith.select %3, %10, %11 : vector<1x128xi1>, vector<1x128xf32>
    %cst_3 = arith.constant dense<0.000000e+00> : vector<1xf32>
    %13 = vector.multi_reduction <add>, %12, %cst_3 [1] : vector<1x128xf32> to vector<1xf32>
    %14 = vector.shape_cast %13 : vector<1xf32> to vector<1x1xf32>
    %15 = vector.broadcast %14 : vector<1x1xf32> to vector<1x128xf32>
    %16 = arith.divf %12, %15 : vector<1x128xf32>
    %c0_4 = arith.constant 0 : index
    %c0_5 = arith.constant 0 : index
    %17 = vector.load %arg1[%c0_4, %c0_5] : memref<128x128xf32, #tpu.memory_space<vmem>>, vector<128x128xf32>
    %cst_6 = arith.constant dense<0.000000e+00> : vector<1x128xf32>
    %18 = tpu.matmul %16, %17, %cst_6 {dimension_numbers = #tpu.dot_dimension_numbers<[1], [0], [0], [1], [0, 0, 1, 1], [], []>} : vector<1x128xf32>, vector<128x128xf32>, vector<1x128xf32> -> vector<1x128xf32>
    %c0_7 = arith.constant 0 : index
    %c0_8 = arith.constant 0 : index
    %19 = vector.load %arg2[%c0_7, %c0_8] : memref<384x128xf32, #tpu.memory_space<vmem>>, vector<384x128xf32>
    %20 = vector.broadcast %18 : vector<1x128xf32> to vector<384x128xf32>
    %21 = arith.mulf %19, %20 : vector<384x128xf32>
    %c0_9 = arith.constant 0 : index
    %c0_10 = arith.constant 0 : index
    %22 = vector.load %arg3[%c0_9, %c0_10] : memref<128x128xf32, #tpu.memory_space<vmem>>, vector<128x128xf32>
    %cst_11 = arith.constant dense<0.000000e+00> : vector<384x128xf32>
    %23 = tpu.matmul %21, %22, %cst_11 {dimension_numbers = #tpu.dot_dimension_numbers<[1], [0], [0], [1], [0, 0, 1, 1], [], []>} : vector<384x128xf32>, vector<128x128xf32>, vector<384x128xf32> -> vector<384x128xf32>
    %c0_12 = arith.constant 0 : index
    %c0_13 = arith.constant 0 : index
    %c0_14 = arith.constant 0 : index
    %24 = vector.load %arg4[%c0_12, %c0_13, %c0_14] : memref<3x128x128xf32, #tpu.memory_space<vmem>>, vector<3x128x128xf32>
    %25 = vector.shape_cast %23 : vector<384x128xf32> to vector<3x128x128xf32>
    %26 = arith.addf %24, %25 : vector<3x128x128xf32>
    %c0_15 = arith.constant 0 : index
    %c0_16 = arith.constant 0 : index
    %c0_17 = arith.constant 0 : index
    %27 = vector.load %arg7[%c0_15, %c0_16, %c0_17] : memref<3x128x128xf32, #tpu.memory_space<vmem>>, vector<3x128x128xf32>
    tpu.vector_store %arg7[%c0_15, %c0_16, %c0_17], %26 {strides = array<i32>} : memref<3x128x128xf32, #tpu.memory_space<vmem>>, vector<3x128x128xf32>,
    %c0_18 = arith.constant 0 : index
    %c0_19 = arith.constant 0 : index
    %28 = vector.load %arg5[%c0_18, %c0_19] : memref<1x128xf32, #tpu.memory_space<vmem>>, vector<1x128xf32>
    %c0_20 = arith.constant 0 : index
    %c0_21 = arith.constant 0 : index
    %29 = vector.load %arg6[%c0_20, %c0_21] : memref<128x128xf32, #tpu.memory_space<vmem>>, vector<128x128xf32>
    %cst_22 = arith.constant dense<0.000000e+00> : vector<1x128xf32>
    %30 = tpu.matmul %16, %29, %cst_22 {dimension_numbers = #tpu.dot_dimension_numbers<[1], [0], [0], [1], [0, 0, 1, 1], [], []>} : vector<1x128xf32>, vector<128x128xf32>, vector<1x128xf32> -> vector<1x128xf32>
    %31 = arith.addf %28, %30 : vector<1x128xf32>
    %c0_23 = arith.constant 0 : index
    %c0_24 = arith.constant 0 : index
    %32 = vector.load %arg8[%c0_23, %c0_24] : memref<1x128xf32, #tpu.memory_space<vmem>>, vector<1x128xf32>
    tpu.vector_store %arg8[%c0_23, %c0_24], %31 {strides = array<i32>} : memref<1x128xf32, #tpu.memory_space<vmem>>, vector<1x128xf32>,
    return
  }
}

</mosaic_0001>

<llo_original>
// kernel: tpu_custom_call.1
$region0: #{tpu_custom_call.1}
  #allocation0 [shape = 'u32[]', space=smem, size = 0x4, offset = 0x4, fixed_abs, tag = 'smem constant byte address 0x4 - core index']
  #allocation1 [shape = 'u32[144,128]{1,0:T(1,128)}', space=vmem, size = 0x12000, scoped, tag = 'internal scratch']
  %s0 = inlined_call_operand.hbm [shape: f32[1,128], index: 0, kind: input, shape index: {}]
  %s1 = inlined_call_operand.hbm [shape: f32[128,128], index: 1, kind: input, shape index: {}]
  %s2 = inlined_call_operand.hbm [shape: f32[384,128], index: 2, kind: input, shape index: {}]
  %s3 = inlined_call_operand.hbm [shape: f32[128,128], index: 3, kind: input, shape index: {}]
  %s4 = inlined_call_operand.hbm [shape: f32[3,128,128], index: 4, kind: input, shape index: {}]
  %s5 = inlined_call_operand.vmem [shape: f32[1,128], index: 5, kind: input, shape index: {}]
  %s6 = inlined_call_operand.hbm [shape: f32[128,128], index: 6, kind: input, shape index: {}]
  %s7 = inlined_call_operand.hbm [shape: f32[3,128,128], index: 7, kind: output, shape index: {0}]
  %s8 = inlined_call_operand.hbm [shape: f32[1,128], index: 8, kind: output, shape index: {1}]
  %9 = xla_tuple %s7, %s8
  %s10 = sld [smem:[#allocation0]]
  $region70: #{tpu_custom_call.1} parent=0
    _
  %s12 = ssub.s32 1, %s10
  %s13 = scalar_select 0, %s12, %s10
  $region1: #{tpu_custom_call.1} parent=0
    #allocation2 [shape = 'u8[512]{0}', space=vmem, size = 0x400, scoped, tag = 'input window, operand 0, single buffered']
    #allocation3 [shape = 's32[1]{0}', space=sflag, size = 0x4, scoped, tag = 'scoped memory for tpu_custom_call.1']
    #allocation4 [shape = 's32[1]{0}', space=sflag, size = 0x4, scoped, tag = 'scoped memory for tpu_custom_call.1']
    #allocation5 [shape = 'u8[65536]{0}', space=vmem, size = 0x10000, scoped, tag = 'input window, operand 1, single buffered']
    #allocation6 [shape = 's32[1]{0}', space=sflag, size = 0x4, scoped, tag = 'scoped memory for tpu_custom_call.1']
    #allocation7 [shape = 'u8[196608]{0}', space=vmem, size = 0x30000, scoped, tag = 'input window, operand 2, single buffered']
    #allocation8 [shape = 'u8[65536]{0}', space=vmem, size = 0x10000, scoped, tag = 'input window, operand 3, single buffered']
    #allocation9 [shape = 's32[1]{0}', space=sflag, size = 0x4, scoped, tag = 'scoped memory for tpu_custom_call.1']
    #allocation10 [shape = 'u8[196608]{0}', space=vmem, size = 0x30000, scoped, tag = 'input window, operand 4, single buffered']
    #allocation11 [shape = 'u8[65536]{0}', space=vmem, size = 0x10000, scoped, tag = 'input window, operand 6, single buffered']
    #allocation12 [shape = 's32[1]{0}', space=sflag, size = 0x4, scoped, tag = 'scoped memory for tpu_custom_call.1']
    #allocation13 [shape = 'u8[196608]{0}', space=vmem, size = 0x30000, scoped, tag = 'output window, operand 0, single buffered']
    #allocation14 [shape = 'u8[512]{0}', space=vmem, size = 0x400, scoped, tag = 'output window, operand 1, single buffered']
    #allocation15 [shape = 's32[1]{0}', space=sflag, size = 0x4, scoped, tag = 'scoped memory for tpu_custom_call.1']
    %14 = vsyncpa [#allocation3], 0
    %15 = vsyncpa [#allocation6], 0
    %16 = vsyncpa [#allocation9], 0
    %17 = vsyncpa [#allocation12], 0
    %18 = vsyncpa [#allocation4], 0
    %19 = vsyncpa [#allocation15], 0
    // Predicated region
    $region2: #{tpu_custom_call.1} parent=1 // pred_check
      _
    $region3: #{tpu_custom_call.1} parent=1 // pred_check_branch
      %21 = sbr.rel (0) target = $region5
    $region4: #{tpu_custom_call.1} parent=1 // pred_region
      %s23 = ssub.s32 16, 16
      %24 = vsyncadd [#allocation3], %s23
      %s26 = sshll.u32 [#allocation2], 4
      %s27 = int_to_ptr.vmem [resolvable:$true] %s26
      %29 = dma.hbm_to_vmem [thread:$0]  %s0, 16, %s27, [#allocation3]
    $region5: #{tpu_custom_call.1} parent=1 // pred_fallthru
      _
    // Predicated region
    $region6: #{tpu_custom_call.1} parent=1 // pred_check
      _
    $region7: #{tpu_custom_call.1} parent=1 // pred_check_branch
      %31 = sbr.rel (0) target = $region9
    $region8: #{tpu_custom_call.1} parent=1 // pred_region
      %s33 = ssub.s32 2048, 2048
      %34 = vsyncadd [#allocation6], %s33
      %s35 = sshll.u32 [#allocation5], 4
      %s36 = int_to_ptr.vmem [resolvable:$true] %s35
      %41 = dma.hbm_to_vmem [thread:$0]  %s1, 2048, %s36, [#allocation6], 128, 128, 8
    $region9: #{tpu_custom_call.1} parent=1 // pred_fallthru
      _
    // Predicated region
    $region10: #{tpu_custom_call.1} parent=1 // pred_check
      _
    $region11: #{tpu_custom_call.1} parent=1 // pred_check_branch
      %43 = sbr.rel (0) target = $region13
    $region12: #{tpu_custom_call.1} parent=1 // pred_region
      %s45 = ssub.s32 6144, 6144
      %46 = vsyncadd [#allocation6], %s45
      %s47 = sshll.u32 [#allocation7], 4
      %s48 = int_to_ptr.vmem [resolvable:$true] %s47
      %53 = dma.hbm_to_vmem [thread:$0]  %s2, 6144, %s48, [#allocation6], 128, 128, 8
    $region13: #{tpu_custom_call.1} parent=1 // pred_fallthru
      _
    // Predicated region
    $region14: #{tpu_custom_call.1} parent=1 // pred_check
      _
    $region15: #{tpu_custom_call.1} parent=1 // pred_check_branch
      %55 = sbr.rel (0) target = $region17
    $region16: #{tpu_custom_call.1} parent=1 // pred_region
      %s57 = ssub.s32 2048, 2048
      %58 = vsyncadd [#allocation9], %s57
      %s59 = sshll.u32 [#allocation8], 4
      %s60 = int_to_ptr.vmem [resolvable:$true] %s59
      %65 = dma.hbm_to_vmem [thread:$0]  %s3, 2048, %s60, [#allocation9], 128, 128, 8
    $region17: #{tpu_custom_call.1} parent=1 // pred_fallthru
      _
    // Predicated region
    $region18: #{tpu_custom_call.1} parent=1 // pred_check
      _
    $region19: #{tpu_custom_call.1} parent=1 // pred_check_branch
      %67 = sbr.rel (0) target = $region21
    $region20: #{tpu_custom_call.1} parent=1 // pred_region
      %s69 = ssub.s32 6144, 6144
      %70 = vsyncadd [#allocation9], %s69
      %s71 = sshll.u32 [#allocation10], 4
      %s72 = int_to_ptr.vmem [resolvable:$true] %s71
      %77 = dma.hbm_to_vmem [thread:$0]  %s4, 6144, %s72, [#allocation9], 128, 128, 8
    $region21: #{tpu_custom_call.1} parent=1 // pred_fallthru
      _
    // Predicated region
    $region22: #{tpu_custom_call.1} parent=1 // pred_check
      _
    $region23: #{tpu_custom_call.1} parent=1 // pred_check_branch
      %79 = sbr.rel (0) target = $region25
    $region24: #{tpu_custom_call.1} parent=1 // pred_region
      _
    $region25: #{tpu_custom_call.1} parent=1 // pred_fallthru
      _
    // Predicated region
    $region26: #{tpu_custom_call.1} parent=1 // pred_check
      _
    $region27: #{tpu_custom_call.1} parent=1 // pred_check_branch
      %81 = sbr.rel (0) target = $region29
    $region28: #{tpu_custom_call.1} parent=1 // pred_region
      %s83 = ssub.s32 2048, 2048
      %84 = vsyncadd [#allocation12], %s83
      %s85 = sshll.u32 [#allocation11], 4
      %s86 = int_to_ptr.vmem [resolvable:$true] %s85
      %91 = dma.hbm_to_vmem [thread:$0]  %s6, 2048, %s86, [#allocation12], 128, 128, 8
    $region29: #{tpu_custom_call.1} parent=1 // pred_fallthru
      _
    // Predicated region
    $region30: #{tpu_custom_call.1} parent=1 // pred_check
      _
    $region31: #{tpu_custom_call.1} parent=1 // pred_check_branch
      %93 = sbr.rel (0) target = $region33
    $region32: #{tpu_custom_call.1} parent=1 // pred_region
      %94 = dma.done [#allocation3], 16
    $region33: #{tpu_custom_call.1} parent=1 // pred_fallthru
      _
    // Predicated region
    $region34: #{tpu_custom_call.1} parent=1 // pred_check
      _
    $region35: #{tpu_custom_call.1} parent=1 // pred_check_branch
      %96 = sbr.rel (0) target = $region37
    $region36: #{tpu_custom_call.1} parent=1 // pred_region
      %97 = dma.done [#allocation6], 2048
    $region37: #{tpu_custom_call.1} parent=1 // pred_fallthru
      _
    // Predicated region
    $region38: #{tpu_custom_call.1} parent=1 // pred_check
      _
    $region39: #{tpu_custom_call.1} parent=1 // pred_check_branch
      %99 = sbr.rel (0) target = $region41
    $region40: #{tpu_custom_call.1} parent=1 // pred_region
      %100 = dma.done [#allocation6], 6144
    $region41: #{tpu_custom_call.1} parent=1 // pred_fallthru
      _
    // Predicated region
    $region42: #{tpu_custom_call.1} parent=1 // pred_check
      _
    $region43: #{tpu_custom_call.1} parent=1 // pred_check_branch
      %102 = sbr.rel (0) target = $region45
    $region44: #{tpu_custom_call.1} parent=1 // pred_region
      %103 = dma.done [#allocation9], 2048
    $region45: #{tpu_custom_call.1} parent=1 // pred_fallthru
      _
    // Predicated region
    $region46: #{tpu_custom_call.1} parent=1 // pred_check
      _
    $region47: #{tpu_custom_call.1} parent=1 // pred_check_branch
      %105 = sbr.rel (0) target = $region49
    $region48: #{tpu_custom_call.1} parent=1 // pred_region
      %106 = dma.done [#allocation9], 6144
    $region49: #{tpu_custom_call.1} parent=1 // pred_fallthru
      _
    // Predicated region
    $region50: #{tpu_custom_call.1} parent=1 // pred_check
      _
    $region51: #{tpu_custom_call.1} parent=1 // pred_check_branch
      %108 = sbr.rel (0) target = $region53
    $region52: #{tpu_custom_call.1} parent=1 // pred_region
      %109 = dma.done [#allocation12], 2048
    $region53: #{tpu_custom_call.1} parent=1 // pred_fallthru
      _
    %v110 = vld [vmem:[#allocation2] sm:$0x1]
    %v111 = vlaneseq
    %v112 = vand.u32 %v111, 127
    %vm113 = vcmp.lt.s32.totalorder %v112, 4
    %v114 = vsel %vm113, %v110, -inf
    %vm115 = vcmask 1040384
    %v116 = vsel %vm115, %v114, -inf
    %117 = vmax.xlane.f32.xlu0 %v116
    %v118 = vpop.xlane.xlu0 %117
    %v119 = vsub.f32 %v114, %v118
    %v120 = vmul.f32 %v119, 1.442695
    %v121 = vpow.pop %v120
    %v122 = vsel %vm113, %v121, 0.0
    %v123 = vsel %vm115, %v122, 0.0
    %124 = vadd.xlane.f32.xlu0 %v123
    %v125 = vpop.xlane.xlu0 %124
    %v126 = vrcp.pop %v125
    %v127 = vmul.f32 %v122, %v126
    %v128 = vld [vmem:[#allocation5] sm:$0xff]
    %v129 = vld [vmem:[#allocation5 + $0x8] sm:$0xff]
    %v130 = vld [vmem:[#allocation5 + $0x10] sm:$0xff]
    %v131 = vld [vmem:[#allocation5 + $0x18] sm:$0xff]
    %v132 = vld [vmem:[#allocation5 + $0x20] sm:$0xff]
    %v133 = vld [vmem:[#allocation5 + $0x28] sm:$0xff]
    %v134 = vld [vmem:[#allocation5 + $0x30] sm:$0xff]
    %v135 = vld [vmem:[#allocation5 + $0x38] sm:$0xff]
    %v136 = vld [vmem:[#allocation5 + $0x40] sm:$0xff]
    %v137 = vld [vmem:[#allocation5 + $0x48] sm:$0xff]
    %v138 = vld [vmem:[#allocation5 + $0x50] sm:$0xff]
    %v139 = vld [vmem:[#allocation5 + $0x58] sm:$0xff]
    %v140 = vld [vmem:[#allocation5 + $0x60] sm:$0xff]
    %v141 = vld [vmem:[#allocation5 + $0x68] sm:$0xff]
    %v142 = vld [vmem:[#allocation5 + $0x70] sm:$0xff]
    %v143 = vld [vmem:[#allocation5 + $0x78] sm:$0xff]
    %144 = vmatprep.subr.mxu0 0.0
    %145 = vmatpush1.msra.mxu0 %v128
    %146 = vmatprep.subr.mxu0 0.0
    %147 = vmatpush1.msra.mxu0 %v129
    %148 = vmatprep.subr.mxu0 0.0
    %149 = vmatpush1.msra.mxu0 %v130
    %150 = vmatprep.subr.mxu0 0.0
    %151 = vmatpush1.msra.mxu0 %v131
    %152 = vmatprep.subr.mxu0 0.0
    %153 = vmatpush1.msra.mxu0 %v132
    %154 = vmatprep.subr.mxu0 0.0
    %155 = vmatpush1.msra.mxu0 %v133
    %156 = vmatprep.subr.mxu0 0.0
    %157 = vmatpush1.msra.mxu0 %v134
    %158 = vmatprep.subr.mxu0 0.0
    %159 = vmatpush1.msra.mxu0 %v135
    %160 = vmatprep.subr.mxu0 0.0
    %161 = vmatpush1.msra.mxu0 %v136
    %162 = vmatprep.subr.mxu0 0.0
    %163 = vmatpush1.msra.mxu0 %v137
    %164 = vmatprep.subr.mxu0 0.0
    %165 = vmatpush1.msra.mxu0 %v138
    %166 = vmatprep.subr.mxu0 0.0
    %167 = vmatpush1.msra.mxu0 %v139
    %168 = vmatprep.subr.mxu0 0.0
    %169 = vmatpush1.msra.mxu0 %v140
    %170 = vmatprep.subr.mxu0 0.0
    %171 = vmatpush1.msra.mxu0 %v141
    %172 = vmatprep.subr.mxu0 0.0
    %173 = vmatpush1.msra.mxu0 %v142
    %174 = vmatprep.subr.mxu0 0.0
    %175 = vmatpush1.msra.mxu0 %v143
    %176 = vmatprep.subr.mxu0 0.0
    %177 = vmatpush1.msra.mxu0 0.0
    %178 = vmatprep.subr.mxu0 0.0
    %179 = vmatpush1.msra.mxu0 0.0
    %180 = vmatprep.subr.mxu0 0.0
    %181 = vmatpush1.msra.mxu0 0.0
    %182 = vmatprep.subr.mxu0 0.0
    %183 = vmatpush1.msra.mxu0 0.0
    %184 = vmatprep.subr.mxu0 0.0
    %185 = vmatpush1.msra.mxu0 0.0
    %186 = vmatprep.subr.mxu0 0.0
    %187 = vmatpush1.msra.mxu0 0.0
    %188 = vmatprep.subr.mxu0 0.0
    %189 = vmatpush1.msra.mxu0 0.0
    %190 = vmatprep.subr.mxu0 0.0
    %191 = vmatpush1.msra.mxu0 0.0
    %192 = vmatprep.subr.mxu0 0.0
    %193 = vmatpush1.msra.mxu0 0.0
    %194 = vmatprep.subr.mxu0 0.0
    %195 = vmatpush1.msra.mxu0 0.0
    %196 = vmatprep.subr.mxu0 0.0
    %197 = vmatpush1.msra.mxu0 0.0
    %198 = vmatprep.subr.mxu0 0.0
    %199 = vmatpush1.msra.mxu0 0.0
    %200 = vmatprep.subr.mxu0 0.0
    %201 = vmatpush1.msra.mxu0 0.0
    %202 = vmatprep.subr.mxu0 0.0
    %203 = vmatpush1.msra.mxu0 0.0
    %204 = vmatprep.subr.mxu0 0.0
    %205 = vmatpush1.msra.mxu0 0.0
    %206 = vmatprep.subr.mxu0 0.0
    %207 = vmatpush1.msra.mxu0 0.0
    %208 = vmatprep.mubr.f32.mxu0 0.0
    %209 = vmatmul.mubr.f32.gmra.mrb[0].mxu0 %v127
    %v210 = vpop.f32.mrb[0].mxu0
    %v211 = vadd.f32 0.0, %v210
    %v212 = vpop.f32.mrb[0].mxu0
    %213 = vdwg.mxu0
    %v214 = vld [vmem:[#allocation7] sm:$0xff]
    %v215 = vld [vmem:[#allocation7 + $0x8] sm:$0xff]
    %v216 = vld [vmem:[#allocation7 + $0x10] sm:$0xff]
    %v217 = vld [vmem:[#allocation7 + $0x18] sm:$0xff]
    %v218 = vld [vmem:[#allocation7 + $0x20] sm:$0xff]
    %v219 = vld [vmem:[#allocation7 + $0x28] sm:$0xff]
    %v220 = vld [vmem:[#allocation7 + $0x30] sm:$0xff]
    %v221 = vld [vmem:[#allocation7 + $0x38] sm:$0xff]
    %v222 = vld [vmem:[#allocation7 + $0x40] sm:$0xff]
    %v223 = vld [vmem:[#allocation7 + $0x48] sm:$0xff]
    %v224 = vld [vmem:[#allocation7 + $0x50] sm:$0xff]
    %v225 = vld [vmem:[#allocation7 + $0x58] sm:$0xff]
    %v226 = vld [vmem:[#allocation7 + $0x60] sm:$0xff]
    %v227 = vld [vmem:[#allocation7 + $0x68] sm:$0xff]
    %v228 = vld [vmem:[#allocation7 + $0x70] sm:$0xff]
    %v229 = vld [vmem:[#allocation7 + $0x78] sm:$0xff]
    %v230 = vld [vmem:[#allocation7 + $0x80] sm:$0xff]
    %v231 = vld [vmem:[#allocation7 + $0x88] sm:$0xff]
    %v232 = vld [vmem:[#allocation7 + $0x90] sm:$0xff]
    %v233 = vld [vmem:[#allocation7 + $0x98] sm:$0xff]
    %v234 = vld [vmem:[#allocation7 + $0xa0] sm:$0xff]
    %v235 = vld [vmem:[#allocation7 + $0xa8] sm:$0xff]
    %v236 = vld [vmem:[#allocation7 + $0xb0] sm:$0xff]
    %v237 = vld [vmem:[#allocation7 + $0xb8] sm:$0xff]
    %v238 = vld [vmem:[#allocation7 + $0xc0] sm:$0xff]
    %v239 = vld [vmem:[#allocation7 + $0xc8] sm:$0xff]
    %v240 = vld [vmem:[#allocation7 + $0xd0] sm:$0xff]
    %v241 = vld [vmem:[#allocation7 + $0xd8] sm:$0xff]
    %v242 = vld [vmem:[#allocation7 + $0xe0] sm:$0xff]
    %v243 = vld [vmem:[#allocation7 + $0xe8] sm:$0xff]
    %v244 = vld [vmem:[#allocation7 + $0xf0] sm:$0xff]
    %v245 = vld [vmem:[#allocation7 + $0xf8] sm:$0xff]
    %v246 = vld [vmem:[#allocation7 + $0x100] sm:$0xff]
    %v247 = vld [vmem:[#allocation7 + $0x108] sm:$0xff]
    %v248 = vld [vmem:[#allocation7 + $0x110] sm:$0xff]
    %v249 = vld [vmem:[#allocation7 + $0x118] sm:$0xff]
    %v250 = vld [vmem:[#allocation7 + $0x120] sm:$0xff]
    %v251 = vld [vmem:[#allocation7 + $0x128] sm:$0xff]
    %v252 = vld [vmem:[#allocation7 + $0x130] sm:$0xff]
    %v253 = vld [vmem:[#allocation7 + $0x138] sm:$0xff]
    %v254 = vld [vmem:[#allocation7 + $0x140] sm:$0xff]
    %v255 = vld [vmem:[#allocation7 + $0x148] sm:$0xff]
    %v256 = vld [vmem:[#allocation7 + $0x150] sm:$0xff]
    %v257 = vld [vmem:[#allocation7 + $0x158] sm:$0xff]
    %v258 = vld [vmem:[#allocation7 + $0x160] sm:$0xff]
    %v259 = vld [vmem:[#allocation7 + $0x168] sm:$0xff]
    %v260 = vld [vmem:[#allocation7 + $0x170] sm:$0xff]
    %v261 = vld [vmem:[#allocation7 + $0x178] sm:$0xff]
    %v262 = vlaneseq
    %v263 = vshrl.u32 %v262, 7
    %v264 = vsub.s32 0, %v263
    %v265 = vrot.slane %v211, %v264
    %v266 = vmul.f32 %v214, %v265
    %v267 = vmul.f32 %v215, %v265
    %v268 = vmul.f32 %v216, %v265
    %v269 = vmul.f32 %v217, %v265
    %v270 = vmul.f32 %v218, %v265
    %v271 = vmul.f32 %v219, %v265
    %v272 = vmul.f32 %v220, %v265
    %v273 = vmul.f32 %v221, %v265
    %v274 = vmul.f32 %v222, %v265
    %v275 = vmul.f32 %v223, %v265
    %v276 = vmul.f32 %v224, %v265
    %v277 = vmul.f32 %v225, %v265
    %v278 = vmul.f32 %v226, %v265
    %v279 = vmul.f32 %v227, %v265
    %v280 = vmul.f32 %v228, %v265
    %v281 = vmul.f32 %v229, %v265
    %v282 = vmul.f32 %v230, %v265
    %v283 = vmul.f32 %v231, %v265
    %v284 = vmul.f32 %v232, %v265
    %v285 = vmul.f32 %v233, %v265
    %v286 = vmul.f32 %v234, %v265
    %v287 = vmul.f32 %v235, %v265
    %v288 = vmul.f32 %v236, %v265
    %v289 = vmul.f32 %v237, %v265
    %v290 = vmul.f32 %v238, %v265
    %v291 = vmul.f32 %v239, %v265
    %v292 = vmul.f32 %v240, %v265
    %v293 = vmul.f32 %v241, %v265
    %v294 = vmul.f32 %v242, %v265
    %v295 = vmul.f32 %v243, %v265
    %v296 = vmul.f32 %v244, %v265
    %v297 = vmul.f32 %v245, %v265
    %v298 = vmul.f32 %v246, %v265
    %v299 = vmul.f32 %v247, %v265
    %v300 = vmul.f32 %v248, %v265
    %v301 = vmul.f32 %v249, %v265
    %v302 = vmul.f32 %v250, %v265
    %v303 = vmul.f32 %v251, %v265
    %v304 = vmul.f32 %v252, %v265
    %v305 = vmul.f32 %v253, %v265
    %v306 = vmul.f32 %v254, %v265
    %v307 = vmul.f32 %v255, %v265
    %v308 = vmul.f32 %v256, %v265
    %v309 = vmul.f32 %v257, %v265
    %v310 = vmul.f32 %v258, %v265
    %v311 = vmul.f32 %v259, %v265
    %v312 = vmul.f32 %v260, %v265
    %v313 = vmul.f32 %v261, %v265
    %v314 = vld [vmem:[#allocation8] sm:$0xff]
    %v315 = vld [vmem:[#allocation8 + $0x8] sm:$0xff]
    %v316 = vld [vmem:[#allocation8 + $0x10] sm:$0xff]
    %v317 = vld [vmem:[#allocation8 + $0x18] sm:$0xff]
    %v318 = vld [vmem:[#allocation8 + $0x20] sm:$0xff]
    %v319 = vld [vmem:[#allocation8 + $0x28] sm:$0xff]
    %v320 = vld [vmem:[#allocation8 + $0x30] sm:$0xff]
    %v321 = vld [vmem:[#allocation8 + $0x38] sm:$0xff]
    %v322 = vld [vmem:[#allocation8 + $0x40] sm:$0xff]
    %v323 = vld [vmem:[#allocation8 + $0x48] sm:$0xff]
    %v324 = vld [vmem:[#allocation8 + $0x50] sm:$0xff]
    %v325 = vld [vmem:[#allocation8 + $0x58] sm:$0xff]
    %v326 = vld [vmem:[#allocation8 + $0x60] sm:$0xff]
    %v327 = vld [vmem:[#allocation8 + $0x68] sm:$0xff]
    %v328 = vld [vmem:[#allocation8 + $0x70] sm:$0xff]
    %v329 = vld [vmem:[#allocation8 + $0x78] sm:$0xff]
    %330 = vmatprep.subr.mxu0 0.0
    %331 = vmatpush1.msra.mxu0 %v314
    %332 = vmatprep.subr.mxu0 0.0
    %333 = vmatpush1.msra.mxu0 %v315
    %334 = vmatprep.subr.mxu0 0.0
    %335 = vmatpush1.msra.mxu0 %v316
    %336 = vmatprep.subr.mxu0 0.0
    %337 = vmatpush1.msra.mxu0 %v317
    %338 = vmatprep.subr.mxu0 0.0
    %339 = vmatpush1.msra.mxu0 %v318
    %340 = vmatprep.subr.mxu0 0.0
    %341 = vmatpush1.msra.mxu0 %v319
    %342 = vmatprep.subr.mxu0 0.0
    %343 = vmatpush1.msra.mxu0 %v320
    %344 = vmatprep.subr.mxu0 0.0
    %345 = vmatpush1.msra.mxu0 %v321
    %346 = vmatprep.subr.mxu0 0.0
    %347 = vmatpush1.msra.mxu0 %v322
    %348 = vmatprep.subr.mxu0 0.0
    %349 = vmatpush1.msra.mxu0 %v323
    %350 = vmatprep.subr.mxu0 0.0
    %351 = vmatpush1.msra.mxu0 %v324
    %352 = vmatprep.subr.mxu0 0.0
    %353 = vmatpush1.msra.mxu0 %v325
    %354 = vmatprep.subr.mxu0 0.0
    %355 = vmatpush1.msra.mxu0 %v326
    %356 = vmatprep.subr.mxu0 0.0
    %357 = vmatpush1.msra.mxu0 %v327
    %358 = vmatprep.subr.mxu0 0.0
    %359 = vmatpush1.msra.mxu0 %v328
    %360 = vmatprep.subr.mxu0 0.0
    %361 = vmatpush1.msra.mxu0 %v329
    %362 = vmatprep.subr.mxu0 0.0
    %363 = vmatpush1.msra.mxu0 0.0
    %364 = vmatprep.subr.mxu0 0.0
    %365 = vmatpush1.msra.mxu0 0.0
    %366 = vmatprep.subr.mxu0 0.0
    %367 = vmatpush1.msra.mxu0 0.0
    %368 = vmatprep.subr.mxu0 0.0
    %369 = vmatpush1.msra.mxu0 0.0
    %370 = vmatprep.subr.mxu0 0.0
    %371 = vmatpush1.msra.mxu0 0.0
    %372 = vmatprep.subr.mxu0 0.0
    %373 = vmatpush1.msra.mxu0 0.0
    %374 = vmatprep.subr.mxu0 0.0
    %375 = vmatpush1.msra.mxu0 0.0
    %376 = vmatprep.subr.mxu0 0.0
    %377 = vmatpush1.msra.mxu0 0.0
    %378 = vmatprep.subr.mxu0 0.0
    %379 = vmatpush1.msra.mxu0 0.0
    %380 = vmatprep.subr.mxu0 0.0
    %381 = vmatpush1.msra.mxu0 0.0
    %382 = vmatprep.subr.mxu0 0.0
    %383 = vmatpush1.msra.mxu0 0.0
    %384 = vmatprep.subr.mxu0 0.0
    %385 = vmatpush1.msra.mxu0 0.0
    %386 = vmatprep.subr.mxu0 0.0
    %387 = vmatpush1.msra.mxu0 0.0
    %388 = vmatprep.subr.mxu0 0.0
    %389 = vmatpush1.msra.mxu0 0.0
    %390 = vmatprep.subr.mxu0 0.0
    %391 = vmatpush1.msra.mxu0 0.0
    %392 = vmatprep.subr.mxu0 0.0
    %393 = vmatpush1.msra.mxu0 0.0
    %394 = vmatprep.mubr.f32.mxu0 0.0
    %395 = vmatmul.mubr.f32.gmra.mrb[0].mxu0 %v266
    %v396 = vpop.f32.mrb[0].mxu0
    %v397 = vadd.f32 0.0, %v396
    %v398 = vpop.f32.mrb[0].mxu0
    %399 = vmatprep.mubr.f32.mxu0 0.0
    %400 = vmatmul.mubr.f32.gmra.mrb[0].mxu0 %v267
    %v401 = vpop.f32.mrb[0].mxu0
    %v402 = vadd.f32 0.0, %v401
    %v403 = vpop.f32.mrb[0].mxu0
    %404 = vmatprep.mubr.f32.mxu0 0.0
    %405 = vmatmul.mubr.f32.gmra.mrb[0].mxu0 %v268
    %v406 = vpop.f32.mrb[0].mxu0
    %v407 = vadd.f32 0.0, %v406
    %v408 = vpop.f32.mrb[0].mxu0
    %409 = vmatprep.mubr.f32.mxu0 0.0
    %410 = vmatmul.mubr.f32.gmra.mrb[0].mxu0 %v269
    %v411 = vpop.f32.mrb[0].mxu0
    %v412 = vadd.f32 0.0, %v411
    %v413 = vpop.f32.mrb[0].mxu0
    %414 = vmatprep.mubr.f32.mxu0 0.0
    %415 = vmatmul.mubr.f32.gmra.mrb[0].mxu0 %v270
    %v416 = vpop.f32.mrb[0].mxu0
    %v417 = vadd.f32 0.0, %v416
    %v418 = vpop.f32.mrb[0].mxu0
    %419 = vmatprep.mubr.f32.mxu0 0.0
    %420 = vmatmul.mubr.f32.gmra.mrb[0].mxu0 %v271
    %v421 = vpop.f32.mrb[0].mxu0
    %v422 = vadd.f32 0.0, %v421
    %v423 = vpop.f32.mrb[0].mxu0
    %424 = vmatprep.mubr.f32.mxu0 0.0
    %425 = vmatmul.mubr.f32.gmra.mrb[0].mxu0 %v272
    %v426 = vpop.f32.mrb[0].mxu0
    %v427 = vadd.f32 0.0, %v426
    %v428 = vpop.f32.mrb[0].mxu0
    %429 = vmatprep.mubr.f32.mxu0 0.0
    %430 = vmatmul.mubr.f32.gmra.mrb[0].mxu0 %v273
    %v431 = vpop.f32.mrb[0].mxu0
    %v432 = vadd.f32 0.0, %v431
    %v433 = vpop.f32.mrb[0].mxu0
    %434 = vmatprep.mubr.f32.mxu0 0.0
    %435 = vmatmul.mubr.f32.gmra.mrb[0].mxu0 %v274
    %v436 = vpop.f32.mrb[0].mxu0
    %v437 = vadd.f32 0.0, %v436
    %v438 = vpop.f32.mrb[0].mxu0
    %439 = vmatprep.mubr.f32.mxu0 0.0
    %440 = vmatmul.mubr.f32.gmra.mrb[0].mxu0 %v275
    %v441 = vpop.f32.mrb[0].mxu0
    %v442 = vadd.f32 0.0, %v441
    %v443 = vpop.f32.mrb[0].mxu0
    %444 = vmatprep.mubr.f32.mxu0 0.0
    %445 = vmatmul.mubr.f32.gmra.mrb[0].mxu0 %v276
    %v446 = vpop.f32.mrb[0].mxu0
    %v447 = vadd.f32 0.0, %v446
    %v448 = vpop.f32.mrb[0].mxu0
    %449 = vmatprep.mubr.f32.mxu0 0.0
    %450 = vmatmul.mubr.f32.gmra.mrb[0].mxu0 %v277
    %v451 = vpop.f32.mrb[0].mxu0
    %v452 = vadd.f32 0.0, %v451
    %v453 = vpop.f32.mrb[0].mxu0
    %454 = vmatprep.mubr.f32.mxu0 0.0
    %455 = vmatmul.mubr.f32.gmra.mrb[0].mxu0 %v278
    %v456 = vpop.f32.mrb[0].mxu0
    %v457 = vadd.f32 0.0, %v456
    %v458 = vpop.f32.mrb[0].mxu0
    %459 = vmatprep.mubr.f32.mxu0 0.0
    %460 = vmatmul.mubr.f32.gmra.mrb[0].mxu0 %v279
    %v461 = vpop.f32.mrb[0].mxu0
    %v462 = vadd.f32 0.0, %v461
    %v463 = vpop.f32.mrb[0].mxu0
    %464 = vmatprep.mubr.f32.mxu0 0.0
    %465 = vmatmul.mubr.f32.gmra.mrb[0].mxu0 %v280
    %v466 = vpop.f32.mrb[0].mxu0
    %v467 = vadd.f32 0.0, %v466
    %v468 = vpop.f32.mrb[0].mxu0
    %469 = vmatprep.mubr.f32.mxu0 0.0
    %470 = vmatmul.mubr.f32.gmra.mrb[0].mxu0 %v281
    %v471 = vpop.f32.mrb[0].mxu0
    %v472 = vadd.f32 0.0, %v471
    %v473 = vpop.f32.mrb[0].mxu0
    %474 = vmatprep.mubr.f32.mxu0 0.0
    %475 = vmatmul.mubr.f32.gmra.mrb[0].mxu0 %v282
    %v476 = vpop.f32.mrb[0].mxu0
    %v477 = vadd.f32 0.0, %v476
    %v478 = vpop.f32.mrb[0].mxu0
    %479 = vmatprep.mubr.f32.mxu0 0.0
    %480 = vmatmul.mubr.f32.gmra.mrb[0].mxu0 %v283
    %v481 = vpop.f32.mrb[0].mxu0
    %v482 = vadd.f32 0.0, %v481
    %v483 = vpop.f32.mrb[0].mxu0
    %484 = vmatprep.mubr.f32.mxu0 0.0
    %485 = vmatmul.mubr.f32.gmra.mrb[0].mxu0 %v284
    %v486 = vpop.f32.mrb[0].mxu0
    %v487 = vadd.f32 0.0, %v486
    %v488 = vpop.f32.mrb[0].mxu0
    %489 = vmatprep.mubr.f32.mxu0 0.0
    %490 = vmatmul.mubr.f32.gmra.mrb[0].mxu0 %v285
    %v491 = vpop.f32.mrb[0].mxu0
    %v492 = vadd.f32 0.0, %v491
    %v493 = vpop.f32.mrb[0].mxu0
    %494 = vmatprep.mubr.f32.mxu0 0.0
    %495 = vmatmul.mubr.f32.gmra.mrb[0].mxu0 %v286
    %v496 = vpop.f32.mrb[0].mxu0
    %v497 = vadd.f32 0.0, %v496
    %v498 = vpop.f32.mrb[0].mxu0
    %499 = vmatprep.mubr.f32.mxu0 0.0
    %500 = vmatmul.mubr.f32.gmra.mrb[0].mxu0 %v287
    %v501 = vpop.f32.mrb[0].mxu0
    %v502 = vadd.f32 0.0, %v501
    %v503 = vpop.f32.mrb[0].mxu0
    %504 = vmatprep.mubr.f32.mxu0 0.0
    %505 = vmatmul.mubr.f32.gmra.mrb[0].mxu0 %v288
    %v506 = vpop.f32.mrb[0].mxu0
    %v507 = vadd.f32 0.0, %v506
    %v508 = vpop.f32.mrb[0].mxu0
    %509 = vmatprep.mubr.f32.mxu0 0.0
    %510 = vmatmul.mubr.f32.gmra.mrb[0].mxu0 %v289
    %v511 = vpop.f32.mrb[0].mxu0
    %v512 = vadd.f32 0.0, %v511
    %v513 = vpop.f32.mrb[0].mxu0
    %514 = vmatprep.mubr.f32.mxu0 0.0
    %515 = vmatmul.mubr.f32.gmra.mrb[0].mxu0 %v290
    %v516 = vpop.f32.mrb[0].mxu0
    %v517 = vadd.f32 0.0, %v516
    %v518 = vpop.f32.mrb[0].mxu0
    %519 = vmatprep.mubr.f32.mxu0 0.0
    %520 = vmatmul.mubr.f32.gmra.mrb[0].mxu0 %v291
    %v521 = vpop.f32.mrb[0].mxu0
    %v522 = vadd.f32 0.0, %v521
    %v523 = vpop.f32.mrb[0].mxu0
    %524 = vmatprep.mubr.f32.mxu0 0.0
    %525 = vmatmul.mubr.f32.gmra.mrb[0].mxu0 %v292
    %v526 = vpop.f32.mrb[0].mxu0
    %v527 = vadd.f32 0.0, %v526
    %v528 = vpop.f32.mrb[0].mxu0
    %529 = vmatprep.mubr.f32.mxu0 0.0
    %530 = vmatmul.mubr.f32.gmra.mrb[0].mxu0 %v293
    %v531 = vpop.f32.mrb[0].mxu0
    %v532 = vadd.f32 0.0, %v531
    %v533 = vpop.f32.mrb[0].mxu0
    %534 = vmatprep.mubr.f32.mxu0 0.0
    %535 = vmatmul.mubr.f32.gmra.mrb[0].mxu0 %v294
    %v536 = vpop.f32.mrb[0].mxu0
    %v537 = vadd.f32 0.0, %v536
    %v538 = vpop.f32.mrb[0].mxu0
    %539 = vmatprep.mubr.f32.mxu0 0.0
    %540 = vmatmul.mubr.f32.gmra.mrb[0].mxu0 %v295
    %v541 = vpop.f32.mrb[0].mxu0
    %v542 = vadd.f32 0.0, %v541
    %v543 = vpop.f32.mrb[0].mxu0
    %544 = vmatprep.mubr.f32.mxu0 0.0
    %545 = vmatmul.mubr.f32.gmra.mrb[0].mxu0 %v296
    %v546 = vpop.f32.mrb[0].mxu0
    %v547 = vadd.f32 0.0, %v546
    %v548 = vpop.f32.mrb[0].mxu0
    %549 = vmatprep.mubr.f32.mxu0 0.0
    %550 = vmatmul.mubr.f32.gmra.mrb[0].mxu0 %v297
    %v551 = vpop.f32.mrb[0].mxu0
    %v552 = vadd.f32 0.0, %v551
    %v553 = vpop.f32.mrb[0].mxu0
    %554 = vmatprep.mubr.f32.mxu0 0.0
    %555 = vmatmul.mubr.f32.gmra.mrb[0].mxu0 %v298
    %v556 = vpop.f32.mrb[0].mxu0
    %v557 = vadd.f32 0.0, %v556
    %v558 = vpop.f32.mrb[0].mxu0
    %559 = vmatprep.mubr.f32.mxu0 0.0
    %560 = vmatmul.mubr.f32.gmra.mrb[0].mxu0 %v299
    %v561 = vpop.f32.mrb[0].mxu0
    %v562 = vadd.f32 0.0, %v561
    %v563 = vpop.f32.mrb[0].mxu0
    %564 = vmatprep.mubr.f32.mxu0 0.0
    %565 = vmatmul.mubr.f32.gmra.mrb[0].mxu0 %v300
    %v566 = vpop.f32.mrb[0].mxu0
    %v567 = vadd.f32 0.0, %v566
    %v568 = vpop.f32.mrb[0].mxu0
    %569 = vmatprep.mubr.f32.mxu0 0.0
    %570 = vmatmul.mubr.f32.gmra.mrb[0].mxu0 %v301
    %v571 = vpop.f32.mrb[0].mxu0
    %v572 = vadd.f32 0.0, %v571
    %v573 = vpop.f32.mrb[0].mxu0
    %574 = vmatprep.mubr.f32.mxu0 0.0
    %575 = vmatmul.mubr.f32.gmra.mrb[0].mxu0 %v302
    %v576 = vpop.f32.mrb[0].mxu0
    %v577 = vadd.f32 0.0, %v576
    %v578 = vpop.f32.mrb[0].mxu0
    %579 = vmatprep.mubr.f32.mxu0 0.0
    %580 = vmatmul.mubr.f32.gmra.mrb[0].mxu0 %v303
    %v581 = vpop.f32.mrb[0].mxu0
    %v582 = vadd.f32 0.0, %v581
    %v583 = vpop.f32.mrb[0].mxu0
    %584 = vmatprep.mubr.f32.mxu0 0.0
    %585 = vmatmul.mubr.f32.gmra.mrb[0].mxu0 %v304
    %v586 = vpop.f32.mrb[0].mxu0
    %v587 = vadd.f32 0.0, %v586
    %v588 = vpop.f32.mrb[0].mxu0
    %589 = vmatprep.mubr.f32.mxu0 0.0
    %590 = vmatmul.mubr.f32.gmra.mrb[0].mxu0 %v305
    %v591 = vpop.f32.mrb[0].mxu0
    %v592 = vadd.f32 0.0, %v591
    %v593 = vpop.f32.mrb[0].mxu0
    %594 = vmatprep.mubr.f32.mxu0 0.0
    %595 = vmatmul.mubr.f32.gmra.mrb[0].mxu0 %v306
    %v596 = vpop.f32.mrb[0].mxu0
    %v597 = vadd.f32 0.0, %v596
    %v598 = vpop.f32.mrb[0].mxu0
    %599 = vmatprep.mubr.f32.mxu0 0.0
    %600 = vmatmul.mubr.f32.gmra.mrb[0].mxu0 %v307
    %v601 = vpop.f32.mrb[0].mxu0
    %v602 = vadd.f32 0.0, %v601
    %v603 = vpop.f32.mrb[0].mxu0
    %604 = vmatprep.mubr.f32.mxu0 0.0
    %605 = vmatmul.mubr.f32.gmra.mrb[0].mxu0 %v308
    %v606 = vpop.f32.mrb[0].mxu0
    %v607 = vadd.f32 0.0, %v606
    %v608 = vpop.f32.mrb[0].mxu0
    %609 = vmatprep.mubr.f32.mxu0 0.0
    %610 = vmatmul.mubr.f32.gmra.mrb[0].mxu0 %v309
    %v611 = vpop.f32.mrb[0].mxu0
    %v612 = vadd.f32 0.0, %v611
    %v613 = vpop.f32.mrb[0].mxu0
    %614 = vmatprep.mubr.f32.mxu0 0.0
    %615 = vmatmul.mubr.f32.gmra.mrb[0].mxu0 %v310
    %v616 = vpop.f32.mrb[0].mxu0
    %v617 = vadd.f32 0.0, %v616
    %v618 = vpop.f32.mrb[0].mxu0
    %619 = vmatprep.mubr.f32.mxu0 0.0
    %620 = vmatmul.mubr.f32.gmra.mrb[0].mxu0 %v311
    %v621 = vpop.f32.mrb[0].mxu0
    %v622 = vadd.f32 0.0, %v621
    %v623 = vpop.f32.mrb[0].mxu0
    %624 = vmatprep.mubr.f32.mxu0 0.0
    %625 = vmatmul.mubr.f32.gmra.mrb[0].mxu0 %v312
    %v626 = vpop.f32.mrb[0].mxu0
    %v627 = vadd.f32 0.0, %v626
    %v628 = vpop.f32.mrb[0].mxu0
    %629 = vmatprep.mubr.f32.mxu0 0.0
    %630 = vmatmul.mubr.f32.gmra.mrb[0].mxu0 %v313
    %v631 = vpop.f32.mrb[0].mxu0
    %v632 = vadd.f32 0.0, %v631
    %v633 = vpop.f32.mrb[0].mxu0
    %634 = vdwg.mxu0
    %v635 = vld [vmem:[#allocation10] sm:$0xff]
    %v636 = vld [vmem:[#allocation10 + $0x8] sm:$0xff]
    %v637 = vld [vmem:[#allocation10 + $0x10] sm:$0xff]
    %v638 = vld [vmem:[#allocation10 + $0x18] sm:$0xff]
    %v639 = vld [vmem:[#allocation10 + $0x20] sm:$0xff]
    %v640 = vld [vmem:[#allocation10 + $0x28] sm:$0xff]
    %v641 = vld [vmem:[#allocation10 + $0x30] sm:$0xff]
    %v642 = vld [vmem:[#allocation10 + $0x38] sm:$0xff]
    %v643 = vld [vmem:[#allocation10 + $0x40] sm:$0xff]
    %v644 = vld [vmem:[#allocation10 + $0x48] sm:$0xff]
    %v645 = vld [vmem:[#allocation10 + $0x50] sm:$0xff]
    %v646 = vld [vmem:[#allocation10 + $0x58] sm:$0xff]
    %v647 = vld [vmem:[#allocation10 + $0x60] sm:$0xff]
    %v648 = vld [vmem:[#allocation10 + $0x68] sm:$0xff]
    %v649 = vld [vmem:[#allocation10 + $0x70] sm:$0xff]
    %v650 = vld [vmem:[#allocation10 + $0x78] sm:$0xff]
    %v651 = vld [vmem:[#allocation10 + $0x80] sm:$0xff]
    %v652 = vld [vmem:[#allocation10 + $0x88] sm:$0xff]
    %v653 = vld [vmem:[#allocation10 + $0x90] sm:$0xff]
    %v654 = vld [vmem:[#allocation10 + $0x98] sm:$0xff]
    %v655 = vld [vmem:[#allocation10 + $0xa0] sm:$0xff]
    %v656 = vld [vmem:[#allocation10 + $0xa8] sm:$0xff]
    %v657 = vld [vmem:[#allocation10 + $0xb0] sm:$0xff]
    %v658 = vld [vmem:[#allocation10 + $0xb8] sm:$0xff]
    %v659 = vld [vmem:[#allocation10 + $0xc0] sm:$0xff]
    %v660 = vld [vmem:[#allocation10 + $0xc8] sm:$0xff]
    %v661 = vld [vmem:[#allocation10 + $0xd0] sm:$0xff]
    %v662 = vld [vmem:[#allocation10 + $0xd8] sm:$0xff]
    %v663 = vld [vmem:[#allocation10 + $0xe0] sm:$0xff]
    %v664 = vld [vmem:[#allocation10 + $0xe8] sm:$0xff]
    %v665 = vld [vmem:[#allocation10 + $0xf0] sm:$0xff]
    %v666 = vld [vmem:[#allocation10 + $0xf8] sm:$0xff]
    %v667 = vld [vmem:[#allocation10 + $0x100] sm:$0xff]
    %v668 = vld [vmem:[#allocation10 + $0x108] sm:$0xff]
    %v669 = vld [vmem:[#allocation10 + $0x110] sm:$0xff]
    %v670 = vld [vmem:[#allocation10 + $0x118] sm:$0xff]
    %v671 = vld [vmem:[#allocation10 + $0x120] sm:$0xff]
    %v672 = vld [vmem:[#allocation10 + $0x128] sm:$0xff]
    %v673 = vld [vmem:[#allocation10 + $0x130] sm:$0xff]
    %v674 = vld [vmem:[#allocation10 + $0x138] sm:$0xff]
    %v675 = vld [vmem:[#allocation10 + $0x140] sm:$0xff]
    %v676 = vld [vmem:[#allocation10 + $0x148] sm:$0xff]
    %v677 = vld [vmem:[#allocation10 + $0x150] sm:$0xff]
    %v678 = vld [vmem:[#allocation10 + $0x158] sm:$0xff]
    %v679 = vld [vmem:[#allocation10 + $0x160] sm:$0xff]
    %v680 = vld [vmem:[#allocation10 + $0x168] sm:$0xff]
    %v681 = vld [vmem:[#allocation10 + $0x170] sm:$0xff]
    %v682 = vld [vmem:[#allocation10 + $0x178] sm:$0xff]
    %v683 = vadd.f32 %v635, %v397
    %v684 = vadd.f32 %v636, %v402
    %v685 = vadd.f32 %v637, %v407
    %v686 = vadd.f32 %v638, %v412
    %v687 = vadd.f32 %v639, %v417
    %v688 = vadd.f32 %v640, %v422
    %v689 = vadd.f32 %v641, %v427
    %v690 = vadd.f32 %v642, %v432
    %v691 = vadd.f32 %v643, %v437
    %v692 = vadd.f32 %v644, %v442
    %v693 = vadd.f32 %v645, %v447
    %v694 = vadd.f32 %v646, %v452
    %v695 = vadd.f32 %v647, %v457
    %v696 = vadd.f32 %v648, %v462
    %v697 = vadd.f32 %v649, %v467
    %v698 = vadd.f32 %v650, %v472
    %v699 = vadd.f32 %v651, %v477
    %v700 = vadd.f32 %v652, %v482
    %v701 = vadd.f32 %v653, %v487
    %v702 = vadd.f32 %v654, %v492
    %v703 = vadd.f32 %v655, %v497
    %v704 = vadd.f32 %v656, %v502
    %v705 = vadd.f32 %v657, %v507
    %v706 = vadd.f32 %v658, %v512
    %v707 = vadd.f32 %v659, %v517
    %v708 = vadd.f32 %v660, %v522
    %v709 = vadd.f32 %v661, %v527
    %v710 = vadd.f32 %v662, %v532
    %v711 = vadd.f32 %v663, %v537
    %v712 = vadd.f32 %v664, %v542
    %v713 = vadd.f32 %v665, %v547
    %v714 = vadd.f32 %v666, %v552
    %v715 = vadd.f32 %v667, %v557
    %v716 = vadd.f32 %v668, %v562
    %v717 = vadd.f32 %v669, %v567
    %v718 = vadd.f32 %v670, %v572
    %v719 = vadd.f32 %v671, %v577
    %v720 = vadd.f32 %v672, %v582
    %v721 = vadd.f32 %v673, %v587
    %v722 = vadd.f32 %v674, %v592
    %v723 = vadd.f32 %v675, %v597
    %v724 = vadd.f32 %v676, %v602
    %v725 = vadd.f32 %v677, %v607
    %v726 = vadd.f32 %v678, %v612
    %v727 = vadd.f32 %v679, %v617
    %v728 = vadd.f32 %v680, %v622
    %v729 = vadd.f32 %v681, %v627
    %v730 = vadd.f32 %v682, %v632
    %731 = vst [vmem:[#allocation13] sm:$0xff] %v683
    %732 = vst [vmem:[#allocation13 + $0x8] sm:$0xff] %v684
    %733 = vst [vmem:[#allocation13 + $0x10] sm:$0xff] %v685
    %734 = vst [vmem:[#allocation13 + $0x18] sm:$0xff] %v686
    %735 = vst [vmem:[#allocation13 + $0x20] sm:$0xff] %v687
    %736 = vst [vmem:[#allocation13 + $0x28] sm:$0xff] %v688
    %737 = vst [vmem:[#allocation13 + $0x30] sm:$0xff] %v689
    %738 = vst [vmem:[#allocation13 + $0x38] sm:$0xff] %v690
    %739 = vst [vmem:[#allocation13 + $0x40] sm:$0xff] %v691
    %740 = vst [vmem:[#allocation13 + $0x48] sm:$0xff] %v692
    %741 = vst [vmem:[#allocation13 + $0x50] sm:$0xff] %v693
    %742 = vst [vmem:[#allocation13 + $0x58] sm:$0xff] %v694
    %743 = vst [vmem:[#allocation13 + $0x60] sm:$0xff] %v695
    %744 = vst [vmem:[#allocation13 + $0x68] sm:$0xff] %v696
    %745 = vst [vmem:[#allocation13 + $0x70] sm:$0xff] %v697
    %746 = vst [vmem:[#allocation13 + $0x78] sm:$0xff] %v698
    %747 = vst [vmem:[#allocation13 + $0x80] sm:$0xff] %v699
    %748 = vst [vmem:[#allocation13 + $0x88] sm:$0xff] %v700
    %749 = vst [vmem:[#allocation13 + $0x90] sm:$0xff] %v701
    %750 = vst [vmem:[#allocation13 + $0x98] sm:$0xff] %v702
    %751 = vst [vmem:[#allocation13 + $0xa0] sm:$0xff] %v703
    %752 = vst [vmem:[#allocation13 + $0xa8] sm:$0xff] %v704
    %753 = vst [vmem:[#allocation13 + $0xb0] sm:$0xff] %v705
    %754 = vst [vmem:[#allocation13 + $0xb8] sm:$0xff] %v706
    %755 = vst [vmem:[#allocation13 + $0xc0] sm:$0xff] %v707
    %756 = vst [vmem:[#allocation13 + $0xc8] sm:$0xff] %v708
    %757 = vst [vmem:[#allocation13 + $0xd0] sm:$0xff] %v709
    %758 = vst [vmem:[#allocation13 + $0xd8] sm:$0xff] %v710
    %759 = vst [vmem:[#allocation13 + $0xe0] sm:$0xff] %v711
    %760 = vst [vmem:[#allocation13 + $0xe8] sm:$0xff] %v712
    %761 = vst [vmem:[#allocation13 + $0xf0] sm:$0xff] %v713
    %762 = vst [vmem:[#allocation13 + $0xf8] sm:$0xff] %v714
    %763 = vst [vmem:[#allocation13 + $0x100] sm:$0xff] %v715
    %764 = vst [vmem:[#allocation13 + $0x108] sm:$0xff] %v716
    %765 = vst [vmem:[#allocation13 + $0x110] sm:$0xff] %v717
    %766 = vst [vmem:[#allocation13 + $0x118] sm:$0xff] %v718
    %767 = vst [vmem:[#allocation13 + $0x120] sm:$0xff] %v719
    %768 = vst [vmem:[#allocation13 + $0x128] sm:$0xff] %v720
    %769 = vst [vmem:[#allocation13 + $0x130] sm:$0xff] %v721
    %770 = vst [vmem:[#allocation13 + $0x138] sm:$0xff] %v722
    %771 = vst [vmem:[#allocation13 + $0x140] sm:$0xff] %v723
    %772 = vst [vmem:[#allocation13 + $0x148] sm:$0xff] %v724
    %773 = vst [vmem:[#allocation13 + $0x150] sm:$0xff] %v725
    %774 = vst [vmem:[#allocation13 + $0x158] sm:$0xff] %v726
    %775 = vst [vmem:[#allocation13 + $0x160] sm:$0xff] %v727
    %776 = vst [vmem:[#allocation13 + $0x168] sm:$0xff] %v728
    %777 = vst [vmem:[#allocation13 + $0x170] sm:$0xff] %v729
    %778 = vst [vmem:[#allocation13 + $0x178] sm:$0xff] %v730
    %v779 = vld [vmem:[%s5] sm:$0x1]
    %v780 = vld [vmem:[#allocation11] sm:$0xff]
    %v781 = vld [vmem:[#allocation11 + $0x8] sm:$0xff]
    %v782 = vld [vmem:[#allocation11 + $0x10] sm:$0xff]
    %v783 = vld [vmem:[#allocation11 + $0x18] sm:$0xff]
    %v784 = vld [vmem:[#allocation11 + $0x20] sm:$0xff]
    %v785 = vld [vmem:[#allocation11 + $0x28] sm:$0xff]
    %v786 = vld [vmem:[#allocation11 + $0x30] sm:$0xff]
    %v787 = vld [vmem:[#allocation11 + $0x38] sm:$0xff]
    %v788 = vld [vmem:[#allocation11 + $0x40] sm:$0xff]
    %v789 = vld [vmem:[#allocation11 + $0x48] sm:$0xff]
    %v790 = vld [vmem:[#allocation11 + $0x50] sm:$0xff]
    %v791 = vld [vmem:[#allocation11 + $0x58] sm:$0xff]
    %v792 = vld [vmem:[#allocation11 + $0x60] sm:$0xff]
    %v793 = vld [vmem:[#allocation11 + $0x68] sm:$0xff]
    %v794 = vld [vmem:[#allocation11 + $0x70] sm:$0xff]
    %v795 = vld [vmem:[#allocation11 + $0x78] sm:$0xff]
    %796 = vmatprep.subr.mxu0 0.0
    %797 = vmatpush1.msra.mxu0 %v780
    %798 = vmatprep.subr.mxu0 0.0
    %799 = vmatpush1.msra.mxu0 %v781
    %800 = vmatprep.subr.mxu0 0.0
    %801 = vmatpush1.msra.mxu0 %v782
    %802 = vmatprep.subr.mxu0 0.0
    %803 = vmatpush1.msra.mxu0 %v783
    %804 = vmatprep.subr.mxu0 0.0
    %805 = vmatpush1.msra.mxu0 %v784
    %806 = vmatprep.subr.mxu0 0.0
    %807 = vmatpush1.msra.mxu0 %v785
    %808 = vmatprep.subr.mxu0 0.0
    %809 = vmatpush1.msra.mxu0 %v786
    %810 = vmatprep.subr.mxu0 0.0
    %811 = vmatpush1.msra.mxu0 %v787
    %812 = vmatprep.subr.mxu0 0.0
    %813 = vmatpush1.msra.mxu0 %v788
    %814 = vmatprep.subr.mxu0 0.0
    %815 = vmatpush1.msra.mxu0 %v789
    %816 = vmatprep.subr.mxu0 0.0
    %817 = vmatpush1.msra.mxu0 %v790
    %818 = vmatprep.subr.mxu0 0.0
    %819 = vmatpush1.msra.mxu0 %v791
    %820 = vmatprep.subr.mxu0 0.0
    %821 = vmatpush1.msra.mxu0 %v792
    %822 = vmatprep.subr.mxu0 0.0
    %823 = vmatpush1.msra.mxu0 %v793
    %824 = vmatprep.subr.mxu0 0.0
    %825 = vmatpush1.msra.mxu0 %v794
    %826 = vmatprep.subr.mxu0 0.0
    %827 = vmatpush1.msra.mxu0 %v795
    %828 = vmatprep.subr.mxu0 0.0
    %829 = vmatpush1.msra.mxu0 0.0
    %830 = vmatprep.subr.mxu0 0.0
    %831 = vmatpush1.msra.mxu0 0.0
    %832 = vmatprep.subr.mxu0 0.0
    %833 = vmatpush1.msra.mxu0 0.0
    %834 = vmatprep.subr.mxu0 0.0
    %835 = vmatpush1.msra.mxu0 0.0
    %836 = vmatprep.subr.mxu0 0.0
    %837 = vmatpush1.msra.mxu0 0.0
    %838 = vmatprep.subr.mxu0 0.0
    %839 = vmatpush1.msra.mxu0 0.0
    %840 = vmatprep.subr.mxu0 0.0
    %841 = vmatpush1.msra.mxu0 0.0
    %842 = vmatprep.subr.mxu0 0.0
    %843 = vmatpush1.msra.mxu0 0.0
    %844 = vmatprep.subr.mxu0 0.0
    %845 = vmatpush1.msra.mxu0 0.0
    %846 = vmatprep.subr.mxu0 0.0
    %847 = vmatpush1.msra.mxu0 0.0
    %848 = vmatprep.subr.mxu0 0.0
    %849 = vmatpush1.msra.mxu0 0.0
    %850 = vmatprep.subr.mxu0 0.0
    %851 = vmatpush1.msra.mxu0 0.0
    %852 = vmatprep.subr.mxu0 0.0
    %853 = vmatpush1.msra.mxu0 0.0
    %854 = vmatprep.subr.mxu0 0.0
    %855 = vmatpush1.msra.mxu0 0.0
    %856 = vmatprep.subr.mxu0 0.0
    %857 = vmatpush1.msra.mxu0 0.0
    %858 = vmatprep.subr.mxu0 0.0
    %859 = vmatpush1.msra.mxu0 0.0
    %860 = vmatprep.mubr.f32.mxu0 0.0
    %861 = vmatmul.mubr.f32.gmra.mrb[0].mxu0 %v127
    %v862 = vpop.f32.mrb[0].mxu0
    %v863 = vadd.f32 0.0, %v862
    %v864 = vpop.f32.mrb[0].mxu0
    %865 = vdwg.mxu0
    %v866 = vadd.f32 %v779, %v863
    %867 = vst [vmem:[#allocation14] sm:$0x1] %v866
    // Predicated region
    $region54: #{tpu_custom_call.1} parent=1 // pred_check
      _
    $region55: #{tpu_custom_call.1} parent=1 // pred_check_branch
      %869 = sbr.rel (0) target = $region57
    $region56: #{tpu_custom_call.1} parent=1 // pred_region
      %s871 = ssub.s32 6144, 6144
      %872 = vsyncadd [#allocation4], %s871
      %s873 = sshll.u32 [#allocation13], 4
      %s874 = int_to_ptr.vmem [resolvable:$true] %s873
      %879 = dma.vmem_to_hbm [thread:$0]  %s874, 6144, %s7, [#allocation4], 128, 128, 8
    $region57: #{tpu_custom_call.1} parent=1 // pred_fallthru
      _
    // Predicated region
    $region58: #{tpu_custom_call.1} parent=1 // pred_check
      _
    $region59: #{tpu_custom_call.1} parent=1 // pred_check_branch
      %881 = sbr.rel (0) target = $region61
    $region60: #{tpu_custom_call.1} parent=1 // pred_region
      %s883 = ssub.s32 16, 16
      %884 = vsyncadd [#allocation15], %s883
      %s886 = sshll.u32 [#allocation14], 4
      %s887 = int_to_ptr.vmem [resolvable:$true] %s886
      %889 = dma.vmem_to_hbm [thread:$0]  %s887, 16, %s8, [#allocation15]
    $region61: #{tpu_custom_call.1} parent=1 // pred_fallthru
      _
    // Predicated region
    $region62: #{tpu_custom_call.1} parent=1 // pred_check
      _
    $region63: #{tpu_custom_call.1} parent=1 // pred_check_branch
      %891 = sbr.rel (0) target = $region65
    $region64: #{tpu_custom_call.1} parent=1 // pred_region
      %892 = dma.done [#allocation4], 6144
    $region65: #{tpu_custom_call.1} parent=1 // pred_fallthru
      _
    // Predicated region
    $region66: #{tpu_custom_call.1} parent=1 // pred_check
      _
    $region67: #{tpu_custom_call.1} parent=1 // pred_check_branch
      %894 = sbr.rel (0) target = $region69
    $region68: #{tpu_custom_call.1} parent=1 // pred_region
      %895 = dma.done [#allocation15], 16
    $region69: #{tpu_custom_call.1} parent=1 // pred_fallthru
      _
    %896 = vsyncpa [#allocation3], 1
    %897 = vsyncpa [#allocation6], 1
    %898 = vsyncpa [#allocation9], 1
    %899 = vsyncpa [#allocation12], 1
    %900 = vsyncpa [#allocation4], 1
    %901 = vsyncpa [#allocation15], 1

</llo_original>
